<compile_context>
chip_gen: v5e
topology: v5e:2x2
jax: 0.10.0
libtpu: 0.0.40
codegen_flags: <defaults>
</compile_context>

<pallas_src>
import functools
import math

import jax
import jax.numpy as jnp
from jax.experimental import pallas as pl
from jax.experimental.pallas import tpu as pltpu

LANE = 128        # vreg lane width
SUBLANE = 8       # f32 sublane count
K_TILE_MAX = 8192  # max contraction tile (multiple of 128); caps VMEM per step
SMALL_N = 256     # below this, keep a single grid step (per-step overhead wins)


def _round_up(x, m):
    return (x + m - 1) // m * m


def _k_geometry(in_dim, k_tile=K_TILE_MAX):
    """Contraction tiling: (tk, k_pad) with tk | k_pad, tk % 128 == 0 (or full)."""
    if in_dim <= k_tile:
        return in_dim, in_dim                      # single K block, no padding
    num_k = -(-in_dim // k_tile)
    tk = _round_up(-(-in_dim // num_k), LANE)
    return tk, tk * num_k


# ----------------------------------------------------------------------------
# Kernel: grid = (batch blocks [parallel], K blocks [arbitrary])
#   k == 0      : zero the f32 accumulator
#   every k     : acc += x_tile @ w1_tile            (MXU, f32 accumulate)
#   k == last   : h = relu(acc + b1); out = h @ w2 + b2   (lane-dense store)
# ----------------------------------------------------------------------------
def linmodel_kernel(x_ref, w1_ref, b_ref, w2_ref, o_ref, acc_ref):
    k = pl.program_id(1)

    @pl.when(k == 0)
    def _init():
        acc_ref[...] = jnp.zeros_like(acc_ref)

    acc_ref[...] += jnp.dot(x_ref[...], w1_ref[...],
                            preferred_element_type=jnp.float32)

    @pl.when(k == pl.num_programs(1) - 1)
    def _finalize():
        f_pad = acc_ref.shape[-1]
        o_pad = o_ref.shape[-1]
        # bias-add + ReLU in f32 (v5e VPU has no bf16); padded lanes stay 0.
        h = jnp.maximum(acc_ref[...] + b_ref[0:1, :f_pad], 0.0)
        out = jnp.dot(h.astype(w2_ref.dtype), w2_ref[...],
                      preferred_element_type=jnp.float32)
        o_ref[...] = out + b_ref[1:2, :o_pad]


# ----------------------------------------------------------------------------
# Init-time parameter preparation (hoisted out of the per-call forward path).
# ----------------------------------------------------------------------------
def prepare_params(w1, b1, w2, b2, *, compute_dtype=jnp.float32,
                   k_tile=K_TILE_MAX):
    """w1: (in_dim, feature_dim) pre-transposed, b1: (feature_dim,),
    w2: (feature_dim, n_classes), b2: (n_classes,).
    Returns (padded_arrays_dict, meta_dict)."""
    in_dim, feature_dim = w1.shape
    assert w2.shape[0] == feature_dim
    n_classes = w2.shape[1]

    tk, k_pad = _k_geometry(in_dim, k_tile)
    f_pad = _round_up(feature_dim, LANE)
    o_pad = _round_up(n_classes, LANE)
    bias_w = max(f_pad, o_pad)

    w1_p = (jnp.zeros((k_pad, f_pad), compute_dtype)
            .at[:in_dim, :feature_dim].set(w1.astype(compute_dtype)))
    w2_p = (jnp.zeros((f_pad, o_pad), compute_dtype)
            .at[:feature_dim, :n_classes].set(w2.astype(compute_dtype)))
    # Both biases in one (2, bias_w) f32 slab: a single tiny DMA.  Legal only
    # because block_shape == full array shape (never tile this spec).
    b_p = (jnp.zeros((2, bias_w), jnp.float32)
           .at[0, :feature_dim].set(b1.astype(jnp.float32))
           .at[1, :n_classes].set(b2.astype(jnp.float32)))

    padded = {"w1": w1_p, "b": b_p, "w2": w2_p}
    meta = {"in_dim": in_dim, "feature_dim": feature_dim,
            "n_classes": n_classes, "tk": tk, "k_pad": k_pad,
            "f_pad": f_pad, "o_pad": o_pad, "bias_w": bias_w}
    return padded, meta


# ----------------------------------------------------------------------------
# Per-call forward.
# ----------------------------------------------------------------------------
def lin_model_forward(x_nchw, padded, meta, *, batch_tile=512):
    w1_p, b_p, w2_p = padded["w1"], padded["b"], padded["w2"]
    n = x_nchw.shape[0]
    in_dim = math.prod(x_nchw.shape[1:])
    assert in_dim == meta["in_dim"]

    tk, k_pad = meta["tk"], meta["k_pad"]
    f_pad, o_pad, bias_w = meta["f_pad"], meta["o_pad"], meta["bias_w"]
    n_classes = meta["n_classes"]
    k_blocks = k_pad // tk

    # glue: flatten NCHW row-major (== torch.flatten(x, 1)); cast to the
    # streamed compute dtype (no-op for f32, halves HBM bytes for bf16).
    x_flat = x_nchw.reshape(n, in_dim).astype(w1_p.dtype)

    # ---- batch tiling -------------------------------------------------------
    if n <= batch_tile:
        if n >= SMALL_N and n % (2 * SUBLANE) == 0:
            tb = n // 2            # 2 blocks: feeds both v7x TCs, no padding
        else:
            tb = n                 # small-N: single full-batch block, no padding
    else:
        tb = _round_up(batch_tile, SUBLANE)
    n_pad = _round_up(n, tb)
    n_blocks = n_pad // tb

    # ---- pad x only if the tiling actually requires it (tail / K pad) ------
    pad_rows = n_pad - n
    pad_cols = k_pad - in_dim
    if pad_rows or pad_cols:
        x_flat = jnp.pad(x_flat, ((0, pad_rows), (0, pad_cols)))

    # ---- VMEM budget / cost estimate ---------------------------------------
    isz = jnp.dtype(w1_p.dtype).itemsize
    vmem_needed = (2 * tb * tk * isz          # x tile, double buffered
                   + 2 * tk * f_pad * isz     # w1 tile, double buffered
                   + 2 * 2 * bias_w * 4       # bias slab
                   + 2 * f_pad * o_pad * isz  # w2
                   + 2 * tb * o_pad * 4       # out tile (f32)
                   + tb * f_pad * 4)          # f32 accumulator scratch
    vmem_limit = int(min(max(2 * vmem_needed, 32 * 1024 * 1024),
                         64 * 1024 * 1024))

    cost = pl.CostEstimate(
        flops=2 * n_pad * k_pad * f_pad + 2 * n_pad * f_pad * o_pad,
        transcendentals=0,
        bytes_accessed=int(n_pad * k_pad * isz + k_pad * f_pad * isz
                           + f_pad * o_pad * isz + 2 * bias_w * 4
                           + n_pad * o_pad * 4),
    )

    out_p = pl.pallas_call(
        linmodel_kernel,
        out_shape=jax.ShapeDtypeStruct((n_pad, o_pad), jnp.float32),
        grid=(n_blocks, k_blocks),
        in_specs=[
            # x tile advances with batch (i) and contraction (k) axes
            pl.BlockSpec((tb, tk), lambda i, k: (i, k)),
            # w1 tile advances with k only
            pl.BlockSpec((tk, f_pad), lambda i, k: (k, 0)),
            # bias slab / w2: constant index_map -> DMA'd once, VMEM-resident
            pl.BlockSpec((2, bias_w), lambda i, k: (0, 0)),
            pl.BlockSpec((f_pad, o_pad), lambda i, k: (0, 0)),
        ],
        out_specs=pl.BlockSpec((tb, o_pad), lambda i, k: (i, 0)),
        scratch_shapes=[pltpu.VMEM((tb, f_pad), jnp.float32)],
        compiler_params=pltpu.CompilerParams(
            dimension_semantics=("parallel", "arbitrary"),
            vmem_limit_bytes=vmem_limit),
        cost_estimate=cost,
    )(x_flat, w1_p, b_p, w2_p)

    # padded rows / lanes are sliced off here (stores inside stay lane-dense)
    return out_p[:n, :n_classes]


def init_linear(key, fan_in, fan_out):
    """nn.Linear-style init: U(-1/sqrt(fan_in), +1/sqrt(fan_in)).
    Weight is returned as (fan_in, fan_out), i.e. pre-transposed for x @ W."""
    kw, kb = jax.random.split(key)
    bound = 1.0 / (fan_in ** 0.5)
    w = jax.random.uniform(kw, (fan_in, fan_out), jnp.float32, -bound, bound)
    b = jax.random.uniform(kb, (fan_out,), jnp.float32, -bound, bound)
    return w, b


if __name__ == "__main__":
    # Small shapes: batch=2, channels=4, spatial=16x16, feature_dim=32, classes=10
    N, C, H, W = 2, 4, 16, 16
    feature_dim = 32
    n_classes = 10
    in_dim = C * H * W

    key = jax.random.PRNGKey(0)
    k_x, k_enc, k_lin = jax.random.split(key, 3)

    x = jax.random.normal(k_x, (N, C, H, W), jnp.float32)
    w1, b1 = init_linear(k_enc, in_dim, feature_dim)      # encoder Linear
    w2, b2 = init_linear(k_lin, feature_dim, n_classes)   # self.lin

    # Pure-JAX reference.
    x_flat = x.reshape(N, in_dim)
    ref = jnp.maximum(x_flat @ w1 + b1, 0.0) @ w2 + b2

    # ---- f32 path (exact-ish check) ----------------------------------------
    padded32, meta32 = prepare_params(w1, b1, w2, b2,
                                      compute_dtype=jnp.float32)
    fwd32 = jax.jit(functools.partial(lin_model_forward, meta=meta32))
    logits = jax.block_until_ready(fwd32(x, padded32))
    assert logits.shape == (N, n_classes)
    assert jnp.allclose(logits, ref, atol=1e-4, rtol=1e-4)

    # ---- bf16-storage path (bandwidth-optimized; f32 accumulation) ---------
    padded16, meta16 = prepare_params(w1, b1, w2, b2,
                                      compute_dtype=jnp.bfloat16)
    fwd16 = jax.jit(functools.partial(lin_model_forward, meta=meta16))
    logits16 = jax.block_until_ready(fwd16(x, padded16))
    assert logits16.shape == (N, n_classes)
    assert jnp.allclose(logits16, ref, atol=5e-2, rtol=5e-2)

    print("KERNEL_OK")
</pallas_src>

<mosaic_0001>
module attributes {stable_mosaic.version = 11 : i64} {
  func.func @linmodel_kernel(%arg0: i32, %arg1: i32, %arg2: memref<2x1024xf32, #tpu.memory_space<vmem>>, %arg3: memref<1024x128xf32, #tpu.memory_space<vmem>>, %arg4: memref<2x128xf32, #tpu.memory_space<vmem>>, %arg5: memref<128x128xf32, #tpu.memory_space<vmem>>, %arg6: memref<2x128xf32, #tpu.memory_space<vmem>>, %arg7: memref<2x128xf32, #tpu.memory_space<vmem>>) attributes {dimension_semantics = [#tpu.dimension_semantics<parallel>, #tpu.dimension_semantics<arbitrary>], iteration_bounds = array<i64: 1, 1>, scalar_prefetch = 0 : i64, scratch_operands = 1 : i64, tpu.core_type = #tpu.core_type<tc>, window_params = [{transform_indices = @transform_0, window_bounds = array<i64: 2, 1024>}, {transform_indices = @transform_1, window_bounds = array<i64: 1024, 128>}, {pipeline_mode = #tpu.pipeline_mode<synchronous>, transform_indices = @transform_2, window_bounds = array<i64: 2, 128>}, {pipeline_mode = #tpu.pipeline_mode<synchronous>, transform_indices = @transform_3, window_bounds = array<i64: 128, 128>}, {transform_indices = @transform_4, window_bounds = array<i64: 2, 128>}]} {
    %c0_i32 = arith.constant 0 : i32
    %0 = arith.cmpi eq, %arg1, %c0_i32 : i32
    %1 = arith.extui %0 : i1 to i32
    %c0_i32_0 = arith.constant 0 : i32
    %2 = arith.cmpi ne, %1, %c0_i32_0 : i32
    scf.if %2 {
      %cst_10 = arith.constant 0.000000e+00 : f32
      %12 = vector.broadcast %cst_10 : f32 to vector<2x128xf32>
      %c0_11 = arith.constant 0 : index
      %c0_12 = arith.constant 0 : index
      %13 = vector.load %arg7[%c0_11, %c0_12] : memref<2x128xf32, #tpu.memory_space<vmem>>, vector<2x128xf32>
      tpu.vector_store %arg7[%c0_11, %c0_12], %12 {strides = array<i32>} : memref<2x128xf32, #tpu.memory_space<vmem>>, vector<2x128xf32>,
    } else {
    }
    %c0 = arith.constant 0 : index
    %c0_1 = arith.constant 0 : index
    %3 = vector.load %arg7[%c0, %c0_1] : memref<2x128xf32, #tpu.memory_space<vmem>>, vector<2x128xf32>
    %c0_2 = arith.constant 0 : index
    %c0_3 = arith.constant 0 : index
    %4 = vector.load %arg2[%c0_2, %c0_3] : memref<2x1024xf32, #tpu.memory_space<vmem>>, vector<2x1024xf32>
    %c0_4 = arith.constant 0 : index
    %c0_5 = arith.constant 0 : index
    %5 = vector.load %arg3[%c0_4, %c0_5] : memref<1024x128xf32, #tpu.memory_space<vmem>>, vector<1024x128xf32>
    %cst = arith.constant dense<0.000000e+00> : vector<2x128xf32>
    %6 = tpu.matmul %4, %5, %cst {dimension_numbers = #tpu.dot_dimension_numbers<[1], [0], [0], [1], [0, 0, 1, 1], [], []>} : vector<2x1024xf32>, vector<1024x128xf32>, vector<2x128xf32> -> vector<2x128xf32>
    %7 = arith.addf %3, %6 : vector<2x128xf32>
    %c0_6 = arith.constant 0 : index
    %c0_7 = arith.constant 0 : index
    %8 = vector.load %arg7[%c0_6, %c0_7] : memref<2x128xf32, #tpu.memory_space<vmem>>, vector<2x128xf32>
    tpu.vector_store %arg7[%c0_6, %c0_7], %7 {strides = array<i32>} : memref<2x128xf32, #tpu.memory_space<vmem>>, vector<2x128xf32>,
    %c0_i32_8 = arith.constant 0 : i32
    %9 = arith.cmpi eq, %arg1, %c0_i32_8 : i32
    %10 = arith.extui %9 : i1 to i32
    %c0_i32_9 = arith.constant 0 : i32
    %11 = arith.cmpi ne, %10, %c0_i32_9 : i32
    scf.if %11 {
      %c0_10 = arith.constant 0 : index
      %c0_11 = arith.constant 0 : index
      %12 = vector.load %arg7[%c0_10, %c0_11] : memref<2x128xf32, #tpu.memory_space<vmem>>, vector<2x128xf32>
      %c0_12 = arith.constant 0 : index
      %c0_13 = arith.constant 0 : index
      %13 = vector.load %arg4[%c0_12, %c0_13] : memref<2x128xf32, #tpu.memory_space<vmem>>, vector<1x128xf32>
      %14 = vector.broadcast %13 : vector<1x128xf32> to vector<2x128xf32>
      %15 = arith.addf %12, %14 : vector<2x128xf32>
      %cst_14 = arith.constant 0.000000e+00 : f32
      %16 = vector.broadcast %cst_14 : f32 to vector<2x128xf32>
      %17 = arith.maximumf %15, %16 : vector<2x128xf32>
      %c0_15 = arith.constant 0 : index
      %c0_16 = arith.constant 0 : index
      %18 = vector.load %arg5[%c0_15, %c0_16] : memref<128x128xf32, #tpu.memory_space<vmem>>, vector<128x128xf32>
      %cst_17 = arith.constant dense<0.000000e+00> : vector<2x128xf32>
      %19 = tpu.matmul %17, %18, %cst_17 {dimension_numbers = #tpu.dot_dimension_numbers<[1], [0], [0], [1], [0, 0, 1, 1], [], []>} : vector<2x128xf32>, vector<128x128xf32>, vector<2x128xf32> -> vector<2x128xf32>
      %c1 = arith.constant 1 : index
      %c0_18 = arith.constant 0 : index
      %20 = vector.load %arg4[%c1, %c0_18] : memref<2x128xf32, #tpu.memory_space<vmem>>, vector<1x128xf32>
      %21 = vector.broadcast %20 : vector<1x128xf32> to vector<2x128xf32>
      %22 = arith.addf %19, %21 : vector<2x128xf32>
      %c0_19 = arith.constant 0 : index
      %c0_20 = arith.constant 0 : index
      %23 = vector.load %arg6[%c0_19, %c0_20] : memref<2x128xf32, #tpu.memory_space<vmem>>, vector<2x128xf32>
      tpu.vector_store %arg6[%c0_19, %c0_20], %22 {strides = array<i32>} : memref<2x128xf32, #tpu.memory_space<vmem>>, vector<2x128xf32>,
    } else {
    }
    return
  }
  func.func @transform_0(%arg0: i32, %arg1: i32) -> (i32, i32) {
    %c0_i32 = arith.constant 0 : i32
    return %arg0, %arg1 : i32, i32
  }
  func.func @transform_1(%arg0: i32, %arg1: i32) -> (i32, i32) {
    %c0_i32 = arith.constant 0 : i32
    %c0_i32_0 = arith.constant 0 : i32
    return %arg1, %c0_i32 : i32, i32
  }
  func.func @transform_2(%arg0: i32, %arg1: i32) -> (i32, i32) {
    %c0_i32 = arith.constant 0 : i32
    %c0_i32_0 = arith.constant 0 : i32
    %c0_i32_1 = arith.constant 0 : i32
    return %c0_i32, %c0_i32_0 : i32, i32
  }
  func.func @transform_3(%arg0: i32, %arg1: i32) -> (i32, i32) {
    %c0_i32 = arith.constant 0 : i32
    %c0_i32_0 = arith.constant 0 : i32
    %c0_i32_1 = arith.constant 0 : i32
    return %c0_i32, %c0_i32_0 : i32, i32
  }
  func.func @transform_4(%arg0: i32, %arg1: i32) -> (i32, i32) {
    %c0_i32 = arith.constant 0 : i32
    %c0_i32_0 = arith.constant 0 : i32
    return %arg0, %c0_i32 : i32, i32
  }
}

</mosaic_0001>

<llo_original>
// kernel: lin_model_forward.1
$region0: #{lin_model_forward.1}
  #allocation0 [shape = 'u32[]', space=smem, size = 0x4, offset = 0x4, fixed_abs, tag = 'smem constant byte address 0x4 - core index']
  #allocation1 [shape = 'u32[72,128]{1,0:T(1,128)}', space=vmem, size = 0x9000, scoped, tag = 'internal scratch']
  #allocation2 [shape = 'f32[2,128]{1,0:T(2,128)}', space=vmem, size = 0x400, scoped, tag = 'scratch operand']
  %s0 = inlined_call_operand.vmem [shape: f32[2,1024], index: 0, kind: input, shape index: {}]
  %s1 = inlined_call_operand.hbm [shape: f32[1024,128], index: 1, kind: input, shape index: {}]
  %s2 = inlined_call_operand.vmem [shape: f32[2,128], index: 2, kind: input, shape index: {}]
  %s3 = inlined_call_operand.vmem [shape: f32[128,128], index: 3, kind: input, shape index: {}]
  %s4 = inlined_call_operand.hbm [shape: f32[2,128], index: 4, kind: output, shape index: {}]
  %s5 = sld [smem:[#allocation0]]
  $region38: #{lin_model_forward.1} parent=0
    _
  %s7 = ssub.s32 1, %s5
  %s8 = scalar_select 0, %s7, %s5
  $region1: #{lin_model_forward.1} parent=0
    #allocation3 [shape = 'u8[524288]{0}', space=vmem, size = 0x80000, scoped, tag = 'input window, operand 1, single buffered']
    #allocation4 [shape = 's32[1]{0}', space=sflag, size = 0x4, scoped, tag = 'scoped memory for lin_model_forward.1']
    #allocation5 [shape = 's32[1]{0}', space=sflag, size = 0x4, scoped, tag = 'scoped memory for lin_model_forward.1']
    #allocation6 [shape = 'u8[1024]{0}', space=vmem, size = 0x400, scoped, tag = 'output window, operand 0, single buffered']
    %9 = vsyncpa [#allocation4], 0
    %10 = vsyncpa [#allocation5], 0
    // Predicated region
    $region2: #{lin_model_forward.1} parent=1 // pred_check
      _
    $region3: #{lin_model_forward.1} parent=1 // pred_check_branch
      %12 = sbr.rel (0) target = $region5
    $region4: #{lin_model_forward.1} parent=1 // pred_region
      _
    $region5: #{lin_model_forward.1} parent=1 // pred_fallthru
      _
    // Predicated region
    $region6: #{lin_model_forward.1} parent=1 // pred_check
      _
    $region7: #{lin_model_forward.1} parent=1 // pred_check_branch
      %14 = sbr.rel (0) target = $region9
    $region8: #{lin_model_forward.1} parent=1 // pred_region
      %16 = vsyncadd [#allocation4], 0
      %s17 = sshll.u32 %s1, 4
      %s18 = int_to_ptr.hbm [resolvable:$true] %s17
      %s19 = sshll.u32 [#allocation3], 4
      %s20 = int_to_ptr.vmem [resolvable:$true] %s19
      %25 = dma.hbm_to_vmem [thread:$0]  %s18, 16384, %s20, [#allocation4], 128, 128, 8
    $region9: #{lin_model_forward.1} parent=1 // pred_fallthru
      _
    // Predicated region
    $region10: #{lin_model_forward.1} parent=1 // pred_check
      _
    $region11: #{lin_model_forward.1} parent=1 // pred_check_branch
      %27 = sbr.rel (0) target = $region13
    $region12: #{lin_model_forward.1} parent=1 // pred_region
      _
    $region13: #{lin_model_forward.1} parent=1 // pred_fallthru
      _
    // Predicated region
    $region14: #{lin_model_forward.1} parent=1 // pred_check
      _
    $region15: #{lin_model_forward.1} parent=1 // pred_check_branch
      %29 = sbr.rel (0) target = $region17
    $region16: #{lin_model_forward.1} parent=1 // pred_region
      _
    $region17: #{lin_model_forward.1} parent=1 // pred_fallthru
      _
    // Predicated region
    $region18: #{lin_model_forward.1} parent=1 // pred_check
      _
    $region19: #{lin_model_forward.1} parent=1 // pred_check_branch
      %31 = sbr.rel (0) target = $region21
    $region20: #{lin_model_forward.1} parent=1 // pred_region
      %33 = dma.done [#allocation4], 16384
    $region21: #{lin_model_forward.1} parent=1 // pred_fallthru
      _
    %p34 = scmp.eq.s32.totalorder 0, 0
    // Predicated region
    $region22: #{lin_model_forward.1} parent=1 // pred_check
      %p35 = pneg %p34
    $region23: #{lin_model_forward.1} parent=1 // pred_check_branch
      %37 = sbr.rel (%p35) target = $region25
    $region24: #{lin_model_forward.1} parent=1 // pred_region
      %38 = vst [vmem:[#allocation2] sm:$0x3] 0.0
    $region25: #{lin_model_forward.1} parent=1 // pred_fallthru
      _
    %v39 = vld [vmem:[#allocation2] sm:$0x3]
    %v40 = vld [vmem:[%s0] sm:$0xff]
    %v41 = vld [vmem:[%s0 + $0x8] sm:$0xff]
    %v42 = vld [vmem:[#allocation3] sm:$0xff]
    %v43 = vld [vmem:[#allocation3 + $0x8] sm:$0xff]
    %v44 = vld [vmem:[#allocation3 + $0x10] sm:$0xff]
    %v45 = vld [vmem:[#allocation3 + $0x18] sm:$0xff]
    %v46 = vld [vmem:[#allocation3 + $0x20] sm:$0xff]
    %v47 = vld [vmem:[#allocation3 + $0x28] sm:$0xff]
    %v48 = vld [vmem:[#allocation3 + $0x30] sm:$0xff]
    %v49 = vld [vmem:[#allocation3 + $0x38] sm:$0xff]
    %v50 = vld [vmem:[#allocation3 + $0x40] sm:$0xff]
    %v51 = vld [vmem:[#allocation3 + $0x48] sm:$0xff]
    %v52 = vld [vmem:[#allocation3 + $0x50] sm:$0xff]
    %v53 = vld [vmem:[#allocation3 + $0x58] sm:$0xff]
    %v54 = vld [vmem:[#allocation3 + $0x60] sm:$0xff]
    %v55 = vld [vmem:[#allocation3 + $0x68] sm:$0xff]
    %v56 = vld [vmem:[#allocation3 + $0x70] sm:$0xff]
    %v57 = vld [vmem:[#allocation3 + $0x78] sm:$0xff]
    %v58 = vld [vmem:[#allocation3 + $0x80] sm:$0xff]
    %v59 = vld [vmem:[#allocation3 + $0x88] sm:$0xff]
    %v60 = vld [vmem:[#allocation3 + $0x90] sm:$0xff]
    %v61 = vld [vmem:[#allocation3 + $0x98] sm:$0xff]
    %v62 = vld [vmem:[#allocation3 + $0xa0] sm:$0xff]
    %v63 = vld [vmem:[#allocation3 + $0xa8] sm:$0xff]
    %v64 = vld [vmem:[#allocation3 + $0xb0] sm:$0xff]
    %v65 = vld [vmem:[#allocation3 + $0xb8] sm:$0xff]
    %v66 = vld [vmem:[#allocation3 + $0xc0] sm:$0xff]
    %v67 = vld [vmem:[#allocation3 + $0xc8] sm:$0xff]
    %v68 = vld [vmem:[#allocation3 + $0xd0] sm:$0xff]
    %v69 = vld [vmem:[#allocation3 + $0xd8] sm:$0xff]
    %v70 = vld [vmem:[#allocation3 + $0xe0] sm:$0xff]
    %v71 = vld [vmem:[#allocation3 + $0xe8] sm:$0xff]
    %v72 = vld [vmem:[#allocation3 + $0xf0] sm:$0xff]
    %v73 = vld [vmem:[#allocation3 + $0xf8] sm:$0xff]
    %v74 = vld [vmem:[#allocation3 + $0x100] sm:$0xff]
    %v75 = vld [vmem:[#allocation3 + $0x108] sm:$0xff]
    %v76 = vld [vmem:[#allocation3 + $0x110] sm:$0xff]
    %v77 = vld [vmem:[#allocation3 + $0x118] sm:$0xff]
    %v78 = vld [vmem:[#allocation3 + $0x120] sm:$0xff]
    %v79 = vld [vmem:[#allocation3 + $0x128] sm:$0xff]
    %v80 = vld [vmem:[#allocation3 + $0x130] sm:$0xff]
    %v81 = vld [vmem:[#allocation3 + $0x138] sm:$0xff]
    %v82 = vld [vmem:[#allocation3 + $0x140] sm:$0xff]
    %v83 = vld [vmem:[#allocation3 + $0x148] sm:$0xff]
    %v84 = vld [vmem:[#allocation3 + $0x150] sm:$0xff]
    %v85 = vld [vmem:[#allocation3 + $0x158] sm:$0xff]
    %v86 = vld [vmem:[#allocation3 + $0x160] sm:$0xff]
    %v87 = vld [vmem:[#allocation3 + $0x168] sm:$0xff]
    %v88 = vld [vmem:[#allocation3 + $0x170] sm:$0xff]
    %v89 = vld [vmem:[#allocation3 + $0x178] sm:$0xff]
    %v90 = vld [vmem:[#allocation3 + $0x180] sm:$0xff]
    %v91 = vld [vmem:[#allocation3 + $0x188] sm:$0xff]
    %v92 = vld [vmem:[#allocation3 + $0x190] sm:$0xff]
    %v93 = vld [vmem:[#allocation3 + $0x198] sm:$0xff]
    %v94 = vld [vmem:[#allocation3 + $0x1a0] sm:$0xff]
    %v95 = vld [vmem:[#allocation3 + $0x1a8] sm:$0xff]
    %v96 = vld [vmem:[#allocation3 + $0x1b0] sm:$0xff]
    %v97 = vld [vmem:[#allocation3 + $0x1b8] sm:$0xff]
    %v98 = vld [vmem:[#allocation3 + $0x1c0] sm:$0xff]
    %v99 = vld [vmem:[#allocation3 + $0x1c8] sm:$0xff]
    %v100 = vld [vmem:[#allocation3 + $0x1d0] sm:$0xff]
    %v101 = vld [vmem:[#allocation3 + $0x1d8] sm:$0xff]
    %v102 = vld [vmem:[#allocation3 + $0x1e0] sm:$0xff]
    %v103 = vld [vmem:[#allocation3 + $0x1e8] sm:$0xff]
    %v104 = vld [vmem:[#allocation3 + $0x1f0] sm:$0xff]
    %v105 = vld [vmem:[#allocation3 + $0x1f8] sm:$0xff]
    %v106 = vld [vmem:[#allocation3 + $0x200] sm:$0xff]
    %v107 = vld [vmem:[#allocation3 + $0x208] sm:$0xff]
    %v108 = vld [vmem:[#allocation3 + $0x210] sm:$0xff]
    %v109 = vld [vmem:[#allocation3 + $0x218] sm:$0xff]
    %v110 = vld [vmem:[#allocation3 + $0x220] sm:$0xff]
    %v111 = vld [vmem:[#allocation3 + $0x228] sm:$0xff]
    %v112 = vld [vmem:[#allocation3 + $0x230] sm:$0xff]
    %v113 = vld [vmem:[#allocation3 + $0x238] sm:$0xff]
    %v114 = vld [vmem:[#allocation3 + $0x240] sm:$0xff]
    %v115 = vld [vmem:[#allocation3 + $0x248] sm:$0xff]
    %v116 = vld [vmem:[#allocation3 + $0x250] sm:$0xff]
    %v117 = vld [vmem:[#allocation3 + $0x258] sm:$0xff]
    %v118 = vld [vmem:[#allocation3 + $0x260] sm:$0xff]
    %v119 = vld [vmem:[#allocation3 + $0x268] sm:$0xff]
    %v120 = vld [vmem:[#allocation3 + $0x270] sm:$0xff]
    %v121 = vld [vmem:[#allocation3 + $0x278] sm:$0xff]
    %v122 = vld [vmem:[#allocation3 + $0x280] sm:$0xff]
    %v123 = vld [vmem:[#allocation3 + $0x288] sm:$0xff]
    %v124 = vld [vmem:[#allocation3 + $0x290] sm:$0xff]
    %v125 = vld [vmem:[#allocation3 + $0x298] sm:$0xff]
    %v126 = vld [vmem:[#allocation3 + $0x2a0] sm:$0xff]
    %v127 = vld [vmem:[#allocation3 + $0x2a8] sm:$0xff]
    %v128 = vld [vmem:[#allocation3 + $0x2b0] sm:$0xff]
    %v129 = vld [vmem:[#allocation3 + $0x2b8] sm:$0xff]
    %v130 = vld [vmem:[#allocation3 + $0x2c0] sm:$0xff]
    %v131 = vld [vmem:[#allocation3 + $0x2c8] sm:$0xff]
    %v132 = vld [vmem:[#allocation3 + $0x2d0] sm:$0xff]
    %v133 = vld [vmem:[#allocation3 + $0x2d8] sm:$0xff]
    %v134 = vld [vmem:[#allocation3 + $0x2e0] sm:$0xff]
    %v135 = vld [vmem:[#allocation3 + $0x2e8] sm:$0xff]
    %v136 = vld [vmem:[#allocation3 + $0x2f0] sm:$0xff]
    %v137 = vld [vmem:[#allocation3 + $0x2f8] sm:$0xff]
    %v138 = vld [vmem:[#allocation3 + $0x300] sm:$0xff]
    %v139 = vld [vmem:[#allocation3 + $0x308] sm:$0xff]
    %v140 = vld [vmem:[#allocation3 + $0x310] sm:$0xff]
    %v141 = vld [vmem:[#allocation3 + $0x318] sm:$0xff]
    %v142 = vld [vmem:[#allocation3 + $0x320] sm:$0xff]
    %v143 = vld [vmem:[#allocation3 + $0x328] sm:$0xff]
    %v144 = vld [vmem:[#allocation3 + $0x330] sm:$0xff]
    %v145 = vld [vmem:[#allocation3 + $0x338] sm:$0xff]
    %v146 = vld [vmem:[#allocation3 + $0x340] sm:$0xff]
    %v147 = vld [vmem:[#allocation3 + $0x348] sm:$0xff]
    %v148 = vld [vmem:[#allocation3 + $0x350] sm:$0xff]
    %v149 = vld [vmem:[#allocation3 + $0x358] sm:$0xff]
    %v150 = vld [vmem:[#allocation3 + $0x360] sm:$0xff]
    %v151 = vld [vmem:[#allocation3 + $0x368] sm:$0xff]
    %v152 = vld [vmem:[#allocation3 + $0x370] sm:$0xff]
    %v153 = vld [vmem:[#allocation3 + $0x378] sm:$0xff]
    %v154 = vld [vmem:[#allocation3 + $0x380] sm:$0xff]
    %v155 = vld [vmem:[#allocation3 + $0x388] sm:$0xff]
    %v156 = vld [vmem:[#allocation3 + $0x390] sm:$0xff]
    %v157 = vld [vmem:[#allocation3 + $0x398] sm:$0xff]
    %v158 = vld [vmem:[#allocation3 + $0x3a0] sm:$0xff]
    %v159 = vld [vmem:[#allocation3 + $0x3a8] sm:$0xff]
    %v160 = vld [vmem:[#allocation3 + $0x3b0] sm:$0xff]
    %v161 = vld [vmem:[#allocation3 + $0x3b8] sm:$0xff]
    %v162 = vld [vmem:[#allocation3 + $0x3c0] sm:$0xff]
    %v163 = vld [vmem:[#allocation3 + $0x3c8] sm:$0xff]
    %v164 = vld [vmem:[#allocation3 + $0x3d0] sm:$0xff]
    %v165 = vld [vmem:[#allocation3 + $0x3d8] sm:$0xff]
    %v166 = vld [vmem:[#allocation3 + $0x3e0] sm:$0xff]
    %v167 = vld [vmem:[#allocation3 + $0x3e8] sm:$0xff]
    %v168 = vld [vmem:[#allocation3 + $0x3f0] sm:$0xff]
    %v169 = vld [vmem:[#allocation3 + $0x3f8] sm:$0xff]
    %172 = vst [vmem:[#allocation1] ss:$4 sm:$0xff] %v40
    %s173 = scalar_lea.vmem [#allocation1], 32
    %174 = vst [vmem:[%s173] ss:$4 sm:$0xff] %v41
    %v175 = vld.sshfl [vmem:[#allocation1] sm:$0xff pattern:$0x73625140]
    %v176 = vld.sshfl [vmem:[#allocation1 + $0x8] sm:$0xff pattern:$0x73625140]
    %v177 = vld.sshfl [vmem:[#allocation1 + $0x10] sm:$0xff pattern:$0x73625140]
    %v178 = vld.sshfl [vmem:[#allocation1 + $0x18] sm:$0xff pattern:$0x73625140]
    %v179 = vld.sshfl [vmem:[#allocation1 + $0x20] sm:$0xff pattern:$0x73625140]
    %v180 = vld.sshfl [vmem:[#allocation1 + $0x28] sm:$0xff pattern:$0x73625140]
    %v181 = vld.sshfl [vmem:[#allocation1 + $0x30] sm:$0xff pattern:$0x73625140]
    %v182 = vld.sshfl [vmem:[#allocation1 + $0x38] sm:$0xff pattern:$0x73625140]
    %191 = vmatpush.msra.mxu0 %v57
    %192 = vmatpush.msra.mxu0 %v56
    %193 = vmatpush.msra.mxu0 %v55
    %194 = vmatpush.msra.mxu0 %v54
    %195 = vmatpush.msra.mxu0 %v53
    %196 = vmatpush.msra.mxu0 %v52
    %197 = vmatpush.msra.mxu0 %v51
    %198 = vmatpush.msra.mxu0 %v50
    %199 = vmatpush.msra.mxu0 %v49
    %200 = vmatpush.msra.mxu0 %v48
    %201 = vmatpush.msra.mxu0 %v47
    %202 = vmatpush.msra.mxu0 %v46
    %203 = vmatpush.msra.mxu0 %v45
    %204 = vmatpush.msra.mxu0 %v44
    %205 = vmatpush.msra.mxu0 %v43
    %206 = vmatpush.msra.mxu0 %v42
    %207 = vmatmul.f32.gmra.mxu0 %v175
    %v208 = vpop.f32.mrf.mxu0
    %v209 = vadd.f32 0.0, %v208
    %210 = vdwg.mxu0
    %211 = vmatpush.msra.mxu0 %v73
    %212 = vmatpush.msra.mxu0 %v72
    %213 = vmatpush.msra.mxu0 %v71
    %214 = vmatpush.msra.mxu0 %v70
    %215 = vmatpush.msra.mxu0 %v69
    %216 = vmatpush.msra.mxu0 %v68
    %217 = vmatpush.msra.mxu0 %v67
    %218 = vmatpush.msra.mxu0 %v66
    %219 = vmatpush.msra.mxu0 %v65
    %220 = vmatpush.msra.mxu0 %v64
    %221 = vmatpush.msra.mxu0 %v63
    %222 = vmatpush.msra.mxu0 %v62
    %223 = vmatpush.msra.mxu0 %v61
    %224 = vmatpush.msra.mxu0 %v60
    %225 = vmatpush.msra.mxu0 %v59
    %226 = vmatpush.msra.mxu0 %v58
    %227 = vmatmul.f32.gmra.mxu0 %v176
    %v228 = vpop.f32.mrf.mxu0
    %v229 = vadd.f32 %v209, %v228
    %230 = vdwg.mxu0
    %231 = vmatpush.msra.mxu0 %v89
    %232 = vmatpush.msra.mxu0 %v88
    %233 = vmatpush.msra.mxu0 %v87
    %234 = vmatpush.msra.mxu0 %v86
    %235 = vmatpush.msra.mxu0 %v85
    %236 = vmatpush.msra.mxu0 %v84
    %237 = vmatpush.msra.mxu0 %v83
    %238 = vmatpush.msra.mxu0 %v82
    %239 = vmatpush.msra.mxu0 %v81
    %240 = vmatpush.msra.mxu0 %v80
    %241 = vmatpush.msra.mxu0 %v79
    %242 = vmatpush.msra.mxu0 %v78
    %243 = vmatpush.msra.mxu0 %v77
    %244 = vmatpush.msra.mxu0 %v76
    %245 = vmatpush.msra.mxu0 %v75
    %246 = vmatpush.msra.mxu0 %v74
    %247 = vmatmul.f32.gmra.mxu0 %v177
    %v248 = vpop.f32.mrf.mxu0
    %v249 = vadd.f32 %v229, %v248
    %250 = vdwg.mxu0
    %251 = vmatpush.msra.mxu0 %v105
    %252 = vmatpush.msra.mxu0 %v104
    %253 = vmatpush.msra.mxu0 %v103
    %254 = vmatpush.msra.mxu0 %v102
    %255 = vmatpush.msra.mxu0 %v101
    %256 = vmatpush.msra.mxu0 %v100
    %257 = vmatpush.msra.mxu0 %v99
    %258 = vmatpush.msra.mxu0 %v98
    %259 = vmatpush.msra.mxu0 %v97
    %260 = vmatpush.msra.mxu0 %v96
    %261 = vmatpush.msra.mxu0 %v95
    %262 = vmatpush.msra.mxu0 %v94
    %263 = vmatpush.msra.mxu0 %v93
    %264 = vmatpush.msra.mxu0 %v92
    %265 = vmatpush.msra.mxu0 %v91
    %266 = vmatpush.msra.mxu0 %v90
    %267 = vmatmul.f32.gmra.mxu0 %v178
    %v268 = vpop.f32.mrf.mxu0
    %v269 = vadd.f32 %v249, %v268
    %270 = vdwg.mxu0
    %271 = vmatpush.msra.mxu0 %v121
    %272 = vmatpush.msra.mxu0 %v120
    %273 = vmatpush.msra.mxu0 %v119
    %274 = vmatpush.msra.mxu0 %v118
    %275 = vmatpush.msra.mxu0 %v117
    %276 = vmatpush.msra.mxu0 %v116
    %277 = vmatpush.msra.mxu0 %v115
    %278 = vmatpush.msra.mxu0 %v114
    %279 = vmatpush.msra.mxu0 %v113
    %280 = vmatpush.msra.mxu0 %v112
    %281 = vmatpush.msra.mxu0 %v111
    %282 = vmatpush.msra.mxu0 %v110
    %283 = vmatpush.msra.mxu0 %v109
    %284 = vmatpush.msra.mxu0 %v108
    %285 = vmatpush.msra.mxu0 %v107
    %286 = vmatpush.msra.mxu0 %v106
    %287 = vmatmul.f32.gmra.mxu0 %v179
    %v288 = vpop.f32.mrf.mxu0
    %v289 = vadd.f32 %v269, %v288
    %290 = vdwg.mxu0
    %291 = vmatpush.msra.mxu0 %v137
    %292 = vmatpush.msra.mxu0 %v136
    %293 = vmatpush.msra.mxu0 %v135
    %294 = vmatpush.msra.mxu0 %v134
    %295 = vmatpush.msra.mxu0 %v133
    %296 = vmatpush.msra.mxu0 %v132
    %297 = vmatpush.msra.mxu0 %v131
    %298 = vmatpush.msra.mxu0 %v130
    %299 = vmatpush.msra.mxu0 %v129
    %300 = vmatpush.msra.mxu0 %v128
    %301 = vmatpush.msra.mxu0 %v127
    %302 = vmatpush.msra.mxu0 %v126
    %303 = vmatpush.msra.mxu0 %v125
    %304 = vmatpush.msra.mxu0 %v124
    %305 = vmatpush.msra.mxu0 %v123
    %306 = vmatpush.msra.mxu0 %v122
    %307 = vmatmul.f32.gmra.mxu0 %v180
    %v308 = vpop.f32.mrf.mxu0
    %v309 = vadd.f32 %v289, %v308
    %310 = vdwg.mxu0
    %311 = vmatpush.msra.mxu0 %v153
    %312 = vmatpush.msra.mxu0 %v152
    %313 = vmatpush.msra.mxu0 %v151
    %314 = vmatpush.msra.mxu0 %v150
    %315 = vmatpush.msra.mxu0 %v149
    %316 = vmatpush.msra.mxu0 %v148
    %317 = vmatpush.msra.mxu0 %v147
    %318 = vmatpush.msra.mxu0 %v146
    %319 = vmatpush.msra.mxu0 %v145
    %320 = vmatpush.msra.mxu0 %v144
    %321 = vmatpush.msra.mxu0 %v143
    %322 = vmatpush.msra.mxu0 %v142
    %323 = vmatpush.msra.mxu0 %v141
    %324 = vmatpush.msra.mxu0 %v140
    %325 = vmatpush.msra.mxu0 %v139
    %326 = vmatpush.msra.mxu0 %v138
    %327 = vmatmul.f32.gmra.mxu0 %v181
    %v328 = vpop.f32.mrf.mxu0
    %v329 = vadd.f32 %v309, %v328
    %330 = vdwg.mxu0
    %331 = vmatpush.msra.mxu0 %v169
    %332 = vmatpush.msra.mxu0 %v168
    %333 = vmatpush.msra.mxu0 %v167
    %334 = vmatpush.msra.mxu0 %v166
    %335 = vmatpush.msra.mxu0 %v165
    %336 = vmatpush.msra.mxu0 %v164
    %337 = vmatpush.msra.mxu0 %v163
    %338 = vmatpush.msra.mxu0 %v162
    %339 = vmatpush.msra.mxu0 %v161
    %340 = vmatpush.msra.mxu0 %v160
    %341 = vmatpush.msra.mxu0 %v159
    %342 = vmatpush.msra.mxu0 %v158
    %343 = vmatpush.msra.mxu0 %v157
    %344 = vmatpush.msra.mxu0 %v156
    %345 = vmatpush.msra.mxu0 %v155
    %346 = vmatpush.msra.mxu0 %v154
    %347 = vmatmul.f32.gmra.mxu0 %v182
    %v348 = vpop.f32.mrf.mxu0
    %v349 = vadd.f32 %v329, %v348
    %350 = vdwg.mxu0
    %v351 = vadd.f32 %v39, %v349
    %352 = vst [vmem:[#allocation2] sm:$0x3] %v351
    // Predicated region
    $region26: #{lin_model_forward.1} parent=1 // pred_check
      %p353 = pneg %p34
    $region27: #{lin_model_forward.1} parent=1 // pred_check_branch
      %355 = sbr.rel (%p353) target = $region29
    $region28: #{lin_model_forward.1} parent=1 // pred_region
      %v356 = vld [vmem:[#allocation2] sm:$0x3]
      %v357 = vld [vmem:[%s2] sm:$0x1]
      %v358 = vperm.slane %v357, 0
      %v359 = vadd.f32 %v356, %v358
      %v360 = vmax.f32 %v359, 0.0
      %v361 = vld [vmem:[%s3] sm:$0xff]
      %v362 = vld [vmem:[%s3 + $0x8] sm:$0xff]
      %v363 = vld [vmem:[%s3 + $0x10] sm:$0xff]
      %v364 = vld [vmem:[%s3 + $0x18] sm:$0xff]
      %v365 = vld [vmem:[%s3 + $0x20] sm:$0xff]
      %v366 = vld [vmem:[%s3 + $0x28] sm:$0xff]
      %v367 = vld [vmem:[%s3 + $0x30] sm:$0xff]
      %v368 = vld [vmem:[%s3 + $0x38] sm:$0xff]
      %v369 = vld [vmem:[%s3 + $0x40] sm:$0xff]
      %v370 = vld [vmem:[%s3 + $0x48] sm:$0xff]
      %v371 = vld [vmem:[%s3 + $0x50] sm:$0xff]
      %v372 = vld [vmem:[%s3 + $0x58] sm:$0xff]
      %v373 = vld [vmem:[%s3 + $0x60] sm:$0xff]
      %v374 = vld [vmem:[%s3 + $0x68] sm:$0xff]
      %v375 = vld [vmem:[%s3 + $0x70] sm:$0xff]
      %v376 = vld [vmem:[%s3 + $0x78] sm:$0xff]
      %v377 = vld [vmem:[%s2 + $0x1] sm:$0x1]
      %v378 = vperm.slane %v377, 0
      %379 = vmatpush.msra.mxu0 %v376
      %380 = vmatpush.msra.mxu0 %v375
      %381 = vmatpush.msra.mxu0 %v374
      %382 = vmatpush.msra.mxu0 %v373
      %383 = vmatpush.msra.mxu0 %v372
      %384 = vmatpush.msra.mxu0 %v371
      %385 = vmatpush.msra.mxu0 %v370
      %386 = vmatpush.msra.mxu0 %v369
      %387 = vmatpush.msra.mxu0 %v368
      %388 = vmatpush.msra.mxu0 %v367
      %389 = vmatpush.msra.mxu0 %v366
      %390 = vmatpush.msra.mxu0 %v365
      %391 = vmatpush.msra.mxu0 %v364
      %392 = vmatpush.msra.mxu0 %v363
      %393 = vmatpush.msra.mxu0 %v362
      %394 = vmatpush.msra.mxu0 %v361
      %395 = vmatmul.f32.gmra.mxu0 %v360
      %v396 = vpop.f32.mrf.mxu0
      %v397 = vadd.f32 %v378, %v396
      %398 = vdwg.mxu0
      %399 = vst [vmem:[#allocation6] sm:$0x3] %v397
    $region29: #{lin_model_forward.1} parent=1 // pred_fallthru
      _
    // Predicated region
    $region30: #{lin_model_forward.1} parent=1 // pred_check
      _
    $region31: #{lin_model_forward.1} parent=1 // pred_check_branch
      %401 = sbr.rel (0) target = $region33
    $region32: #{lin_model_forward.1} parent=1 // pred_region
      %403 = vsyncadd [#allocation5], 0
      %s405 = sshll.u32 [#allocation6], 4
      %s406 = int_to_ptr.vmem [resolvable:$true] %s405
      %s407 = sshll.u32 %s4, 4
      %s408 = int_to_ptr.hbm [resolvable:$true] %s407
      %410 = dma.vmem_to_hbm [thread:$0]  %s406, 32, %s408, [#allocation5]
    $region33: #{lin_model_forward.1} parent=1 // pred_fallthru
      _
    // Predicated region
    $region34: #{lin_model_forward.1} parent=1 // pred_check
      _
    $region35: #{lin_model_forward.1} parent=1 // pred_check_branch
      %412 = sbr.rel (0) target = $region37
    $region36: #{lin_model_forward.1} parent=1 // pred_region
      %414 = dma.done [#allocation5], 32
    $region37: #{lin_model_forward.1} parent=1 // pred_fallthru
      _
    %415 = vsyncpa [#allocation4], 1
    %416 = vsyncpa [#allocation5], 1

</llo_original>
